<compile_context>
chip_gen: v5e
topology: v5e:2x2
jax: 0.10.0
libtpu: 0.0.40
codegen_flags: <defaults>
</compile_context>

<pallas_src>
import jax
import jax.numpy as jnp
import numpy as np
from jax.experimental import pallas as pl
from jax.experimental.pallas import tpu as pltpu


def _round_up(x, m):
    return ((x + m - 1) // m) * m


def _odefunc_g_kernel(t_ref, y_ref, wt_ref, wy_ref, b_ref, o_ref):
    # t_ref  : SMEM (1, 1) f32 scalar time
    # y_ref  : VMEM [TB, F]   streamed batch tile
    # wt_ref : VMEM [1, F]    time-channel column of W (resident)
    # wy_ref : VMEM [F, F]    W[:F, 1:].T (resident)
    # b_ref  : VMEM [1, F]    bias[:F] (resident)
    # o_ref  : VMEM [TB, F]   output tile
    t = t_ref[0, 0]
    bias_eff = t * wt_ref[...] + b_ref[...]                       # [1, F]
    acc = jnp.dot(y_ref[...], wy_ref[...],
                  preferred_element_type=jnp.float32)             # [TB, F]
    o_ref[...] = (acc + bias_eff).astype(o_ref.dtype)


def pack_odefunc_g_params(weight, bias, input_dim):
    """One-time parameter packing (call at module init, not per evaluation).

    Folds the torch concat([t, y]) and the [:, :input_dim+2] output slice
    into pre-sliced parameter arrays.
    """
    F = input_dim + 2
    D = input_dim + 3
    weight = jnp.asarray(weight, jnp.float32)
    bias = jnp.asarray(bias, jnp.float32)
    assert weight.shape == (D, D)
    assert bias.shape == (D,)
    w_t = weight[:F, 0].reshape(1, F)      # time-channel column
    w_yT = weight[:F, 1:].T                # (F, F): y @ w_yT = y @ W[:F,1:].T
    b = bias[:F].reshape(1, F)
    return w_t, w_yT, b


def ode_func_g(t, y, w_t, w_yT, b, *, block_b=1024):
    """Pallas implementation of ODEFuncG.forward(t, y) with packed params.

    Args:
      t:      python/JAX scalar time.
      y:      [B, input_dim + 2] float32.
      w_t:    [1, F] packed time-channel weights (from pack_odefunc_g_params).
      w_yT:   [F, F] packed state weights.
      b:      [1, F] packed bias.

    Returns:
      [B, input_dim + 2] float32.
    """
    B, F = y.shape
    assert w_t.shape == (1, F)
    assert w_yT.shape == (F, F)
    assert b.shape == (1, F)

    t_arr = jnp.asarray(t, dtype=jnp.float32).reshape(1, 1)

    # Batch tile: large to amortize the ~0.35 us/grid-step pipeline overhead,
    # but capped so the grid has >= 2 steps when B allows (v7x megacore gets
    # both TensorCores via the "parallel" batch axis).  Always a multiple of 8.
    if B >= 2 * block_b:
        tb = block_b
    elif B > 8:
        tb = min(block_b, _round_up(pl.cdiv(B, 2), 8))
    else:
        tb = _round_up(max(B, 1), 8)
    grid = (pl.cdiv(B, tb),)

    out = pl.pallas_call(
        _odefunc_g_kernel,
        out_shape=jax.ShapeDtypeStruct((B, F), y.dtype),
        grid_spec=pltpu.PrefetchScalarGridSpec(
            num_scalar_prefetch=0,
            grid=grid,
            in_specs=[
                pl.BlockSpec((1, 1), lambda i: (0, 0),
                             memory_space=pltpu.MemorySpace.SMEM),  # t scalar
                pl.BlockSpec((tb, F), lambda i: (i, 0)),            # y (streamed)
                pl.BlockSpec((1, F), lambda i: (0, 0)),             # w_t (resident)
                pl.BlockSpec((F, F), lambda i: (0, 0)),             # w_yT (resident)
                pl.BlockSpec((1, F), lambda i: (0, 0)),             # bias (resident)
            ],
            out_specs=pl.BlockSpec((tb, F), lambda i: (i, 0)),
        ),
        compiler_params=pltpu.CompilerParams(
            dimension_semantics=("parallel",)),
    )(t_arr, y, w_t, w_yT, b)

    return out


def _reference(t, y, weight, bias, input_dim):
    B = y.shape[0]
    t_vec = jnp.ones((B, 1), dtype=y.dtype) * t
    t_and_y = jnp.concatenate([t_vec, y], axis=1)
    full = t_and_y @ weight.T + bias
    return full[:, : input_dim + 2]


if __name__ == "__main__":
    input_dim = 4
    B = 8
    F = input_dim + 2          # augmented state width (y columns)
    D = input_dim + 3          # linear in/out features

    key = jax.random.PRNGKey(0)
    k_y, k_w, k_b = jax.random.split(key, 3)

    # Deterministic "PyTorch-like" Linear init: U(-1/sqrt(in), 1/sqrt(in)).
    bound = 1.0 / np.sqrt(D)
    weight = jax.random.uniform(k_w, (D, D), jnp.float32, -bound, bound)
    bias = jax.random.uniform(k_b, (D,), jnp.float32, -bound, bound)

    y = jax.random.normal(k_y, (B, F), jnp.float32)
    t = 0.37

    # Pack once (module init), then evaluate f(t, y).
    w_t, w_yT, b_pk = pack_odefunc_g_params(weight, bias, input_dim)
    out = ode_func_g(t, y, w_t, w_yT, b_pk)
    out = jax.block_until_ready(out)

    ref = _reference(jnp.float32(t), y, weight, bias, input_dim)
    np.testing.assert_allclose(np.asarray(out), np.asarray(ref),
                               rtol=1e-5, atol=1e-5)

    print("KERNEL_OK")
</pallas_src>

<mosaic_0001>
module attributes {stable_mosaic.version = 11 : i64} {
  func.func @_odefunc_g_kernel(%arg0: i32, %arg1: memref<1x1xf32, #tpu.memory_space<smem>>, %arg2: memref<8x6xf32, #tpu.memory_space<vmem>>, %arg3: memref<1x6xf32, #tpu.memory_space<vmem>>, %arg4: memref<6x6xf32, #tpu.memory_space<vmem>>, %arg5: memref<1x6xf32, #tpu.memory_space<vmem>>, %arg6: memref<8x6xf32, #tpu.memory_space<vmem>>) attributes {dimension_semantics = [#tpu.dimension_semantics<parallel>], iteration_bounds = array<i64: 1>, scalar_prefetch = 0 : i64, scratch_operands = 0 : i64, tpu.core_type = #tpu.core_type<tc>, window_params = [{transform_indices = @transform_0, window_bounds = array<i64: 1, 1>}, {transform_indices = @transform_1, window_bounds = array<i64: 8, 6>}, {pipeline_mode = #tpu.pipeline_mode<synchronous>, transform_indices = @transform_2, window_bounds = array<i64: 1, 6>}, {pipeline_mode = #tpu.pipeline_mode<synchronous>, transform_indices = @transform_3, window_bounds = array<i64: 6, 6>}, {pipeline_mode = #tpu.pipeline_mode<synchronous>, transform_indices = @transform_4, window_bounds = array<i64: 1, 6>}, {transform_indices = @transform_5, window_bounds = array<i64: 8, 6>}]} {
    %c0 = arith.constant 0 : index
    %c0_0 = arith.constant 0 : index
    %0 = memref.load %arg1[%c0, %c0_0] : memref<1x1xf32, #tpu.memory_space<smem>>
    %c0_1 = arith.constant 0 : index
    %c0_2 = arith.constant 0 : index
    %1 = vector.load %arg3[%c0_1, %c0_2] : memref<1x6xf32, #tpu.memory_space<vmem>>, vector<1x6xf32>
    %2 = vector.broadcast %0 : f32 to vector<1x6xf32>
    %3 = arith.mulf %2, %1 : vector<1x6xf32>
    %c0_3 = arith.constant 0 : index
    %c0_4 = arith.constant 0 : index
    %4 = vector.load %arg5[%c0_3, %c0_4] : memref<1x6xf32, #tpu.memory_space<vmem>>, vector<1x6xf32>
    %5 = arith.addf %3, %4 : vector<1x6xf32>
    %c0_5 = arith.constant 0 : index
    %c0_6 = arith.constant 0 : index
    %6 = vector.load %arg2[%c0_5, %c0_6] : memref<8x6xf32, #tpu.memory_space<vmem>>, vector<8x6xf32>
    %c0_7 = arith.constant 0 : index
    %c0_8 = arith.constant 0 : index
    %7 = vector.load %arg4[%c0_7, %c0_8] : memref<6x6xf32, #tpu.memory_space<vmem>>, vector<6x6xf32>
    %cst = arith.constant dense<0.000000e+00> : vector<8x6xf32>
    %8 = tpu.matmul %6, %7, %cst {dimension_numbers = #tpu.dot_dimension_numbers<[1], [0], [0], [1], [0, 0, 1, 1], [], []>} : vector<8x6xf32>, vector<6x6xf32>, vector<8x6xf32> -> vector<8x6xf32>
    %9 = vector.broadcast %5 : vector<1x6xf32> to vector<8x6xf32>
    %10 = arith.addf %8, %9 : vector<8x6xf32>
    %c0_9 = arith.constant 0 : index
    %c0_10 = arith.constant 0 : index
    %11 = vector.load %arg6[%c0_9, %c0_10] : memref<8x6xf32, #tpu.memory_space<vmem>>, vector<8x6xf32>
    tpu.vector_store %arg6[%c0_9, %c0_10], %10 {strides = array<i32>} : memref<8x6xf32, #tpu.memory_space<vmem>>, vector<8x6xf32>,
    return
  }
  func.func @transform_0(%arg0: i32) -> (i32, i32) {
    %c0_i32 = arith.constant 0 : i32
    %c0_i32_0 = arith.constant 0 : i32
    %c0_i32_1 = arith.constant 0 : i32
    return %c0_i32, %c0_i32_0 : i32, i32
  }
  func.func @transform_1(%arg0: i32) -> (i32, i32) {
    %c0_i32 = arith.constant 0 : i32
    %c0_i32_0 = arith.constant 0 : i32
    return %arg0, %c0_i32 : i32, i32
  }
  func.func @transform_2(%arg0: i32) -> (i32, i32) {
    %c0_i32 = arith.constant 0 : i32
    %c0_i32_0 = arith.constant 0 : i32
    %c0_i32_1 = arith.constant 0 : i32
    return %c0_i32, %c0_i32_0 : i32, i32
  }
  func.func @transform_3(%arg0: i32) -> (i32, i32) {
    %c0_i32 = arith.constant 0 : i32
    %c0_i32_0 = arith.constant 0 : i32
    %c0_i32_1 = arith.constant 0 : i32
    return %c0_i32, %c0_i32_0 : i32, i32
  }
  func.func @transform_4(%arg0: i32) -> (i32, i32) {
    %c0_i32 = arith.constant 0 : i32
    %c0_i32_0 = arith.constant 0 : i32
    %c0_i32_1 = arith.constant 0 : i32
    return %c0_i32, %c0_i32_0 : i32, i32
  }
  func.func @transform_5(%arg0: i32) -> (i32, i32) {
    %c0_i32 = arith.constant 0 : i32
    %c0_i32_0 = arith.constant 0 : i32
    return %arg0, %c0_i32 : i32, i32
  }
}

</mosaic_0001>

<llo_original>
// kernel: tpu_custom_call.1
$region0: #{tpu_custom_call.1}
  #allocation0 [shape = 'u32[]', space=smem, size = 0x4, offset = 0x4, fixed_abs, tag = 'smem constant byte address 0x4 - core index']
  #allocation1 [shape = 'u32[72,128]{1,0:T(1,128)}', space=vmem, size = 0x9000, scoped, tag = 'internal scratch']
  #allocation2 [shape = 'f32[1,1]{1,0:T(1,128)S(6)}', space=smem, size = 0x200, scoped, tag = 'scoped memory for tpu_custom_call.1']
  %s0 = inlined_call_operand.<no memory space> [shape: f32[1,1], index: 0, kind: input, shape index: {}]
  %s1 = inlined_call_operand.hbm [shape: f32[8,6], index: 1, kind: input, shape index: {}]
  %s2 = inlined_call_operand.vmem [shape: f32[1,6], index: 2, kind: input, shape index: {}]
  %s3 = inlined_call_operand.hbm [shape: f32[6,6], index: 3, kind: input, shape index: {}]
  %s4 = inlined_call_operand.vmem [shape: f32[1,6], index: 4, kind: input, shape index: {}]
  %s5 = inlined_call_operand.hbm [shape: f32[8,6], index: 5, kind: output, shape index: {}]
  %s6 = sld [smem:[#allocation0]]
  $region38: #{tpu_custom_call.1} parent=0
    _
  %s8 = ssub.s32 1, %s6
  %s9 = scalar_select 0, %s8, %s6
  %10 = sst [smem:[#allocation2]] %s0
  $region1: #{tpu_custom_call.1} parent=0
    #allocation3 [shape = 'u8[4096]{0}', space=vmem, size = 0x1000, scoped, tag = 'input window, operand 1, single buffered']
    #allocation4 [shape = 's32[1]{0}', space=sflag, size = 0x4, scoped, tag = 'scoped memory for tpu_custom_call.1']
    #allocation5 [shape = 's32[1]{0}', space=sflag, size = 0x4, scoped, tag = 'scoped memory for tpu_custom_call.1']
    #allocation6 [shape = 'u8[4096]{0}', space=vmem, size = 0x1000, scoped, tag = 'input window, operand 3, single buffered']
    #allocation7 [shape = 's32[1]{0}', space=sflag, size = 0x4, scoped, tag = 'scoped memory for tpu_custom_call.1']
    #allocation8 [shape = 'u8[4096]{0}', space=vmem, size = 0x1000, scoped, tag = 'output window, operand 0, single buffered']
    %11 = vsyncpa [#allocation4], 0
    %12 = vsyncpa [#allocation7], 0
    %13 = vsyncpa [#allocation5], 0
    // Predicated region
    $region2: #{tpu_custom_call.1} parent=1 // pred_check
      _
    $region3: #{tpu_custom_call.1} parent=1 // pred_check_branch
      %15 = sbr.rel (0) target = $region5
    $region4: #{tpu_custom_call.1} parent=1 // pred_region
      _
    $region5: #{tpu_custom_call.1} parent=1 // pred_fallthru
      _
    // Predicated region
    $region6: #{tpu_custom_call.1} parent=1 // pred_check
      _
    $region7: #{tpu_custom_call.1} parent=1 // pred_check_branch
      %17 = sbr.rel (0) target = $region9
    $region8: #{tpu_custom_call.1} parent=1 // pred_region
      %19 = vsyncadd [#allocation4], 0
      %s21 = sshll.u32 %s1, 4
      %s22 = int_to_ptr.hbm [resolvable:$true] %s21
      %s23 = sshll.u32 [#allocation3], 4
      %s24 = int_to_ptr.vmem [resolvable:$true] %s23
      %26 = dma.hbm_to_vmem [thread:$0]  %s22, 128, %s24, [#allocation4]
    $region9: #{tpu_custom_call.1} parent=1 // pred_fallthru
      _
    // Predicated region
    $region10: #{tpu_custom_call.1} parent=1 // pred_check
      _
    $region11: #{tpu_custom_call.1} parent=1 // pred_check_branch
      %28 = sbr.rel (0) target = $region13
    $region12: #{tpu_custom_call.1} parent=1 // pred_region
      _
    $region13: #{tpu_custom_call.1} parent=1 // pred_fallthru
      _
    // Predicated region
    $region14: #{tpu_custom_call.1} parent=1 // pred_check
      _
    $region15: #{tpu_custom_call.1} parent=1 // pred_check_branch
      %30 = sbr.rel (0) target = $region17
    $region16: #{tpu_custom_call.1} parent=1 // pred_region
      %32 = vsyncadd [#allocation7], 0
      %s34 = sshll.u32 %s3, 4
      %s35 = int_to_ptr.hbm [resolvable:$true] %s34
      %s36 = sshll.u32 [#allocation6], 4
      %s37 = int_to_ptr.vmem [resolvable:$true] %s36
      %39 = dma.hbm_to_vmem [thread:$0]  %s35, 128, %s37, [#allocation7]
    $region17: #{tpu_custom_call.1} parent=1 // pred_fallthru
      _
    // Predicated region
    $region18: #{tpu_custom_call.1} parent=1 // pred_check
      _
    $region19: #{tpu_custom_call.1} parent=1 // pred_check_branch
      %41 = sbr.rel (0) target = $region21
    $region20: #{tpu_custom_call.1} parent=1 // pred_region
      _
    $region21: #{tpu_custom_call.1} parent=1 // pred_fallthru
      _
    // Predicated region
    $region22: #{tpu_custom_call.1} parent=1 // pred_check
      _
    $region23: #{tpu_custom_call.1} parent=1 // pred_check_branch
      %43 = sbr.rel (0) target = $region25
    $region24: #{tpu_custom_call.1} parent=1 // pred_region
      %45 = dma.done [#allocation4], 128
    $region25: #{tpu_custom_call.1} parent=1 // pred_fallthru
      _
    // Predicated region
    $region26: #{tpu_custom_call.1} parent=1 // pred_check
      _
    $region27: #{tpu_custom_call.1} parent=1 // pred_check_branch
      %47 = sbr.rel (0) target = $region29
    $region28: #{tpu_custom_call.1} parent=1 // pred_region
      %49 = dma.done [#allocation7], 128
    $region29: #{tpu_custom_call.1} parent=1 // pred_fallthru
      _
    %s50 = sld [smem:[#allocation2]]
    %v51 = vld [vmem:[%s2] sm:$0x1]
    %v52 = vstv %s50
    %v53 = vmul.f32 %v52, %v51
    %v54 = vld [vmem:[%s4] sm:$0x1]
    %v55 = vadd.f32 %v53, %v54
    %v56 = vld [vmem:[#allocation3] sm:$0xff]
    %v57 = vld [vmem:[#allocation6] sm:$0x3f]
    %v59 = vperm.slane %v55, 0
    %vm61 = vcmask 48128
    %v63 = vsel %vm61, %v56, 0
    %vm65 = vcmask 1045504
    %v67 = vsel %vm65, %v57, 0
    %69 = vmatpush.msra.mxu0 0.0
    %70 = vmatpush.msra.mxu0 0.0
    %71 = vmatpush.msra.mxu0 0.0
    %72 = vmatpush.msra.mxu0 0.0
    %73 = vmatpush.msra.mxu0 0.0
    %74 = vmatpush.msra.mxu0 0.0
    %75 = vmatpush.msra.mxu0 0.0
    %76 = vmatpush.msra.mxu0 0.0
    %77 = vmatpush.msra.mxu0 0.0
    %78 = vmatpush.msra.mxu0 0.0
    %79 = vmatpush.msra.mxu0 0.0
    %80 = vmatpush.msra.mxu0 0.0
    %81 = vmatpush.msra.mxu0 0.0
    %82 = vmatpush.msra.mxu0 0.0
    %83 = vmatpush.msra.mxu0 0.0
    %84 = vmatpush.msra.mxu0 %v67
    %85 = vmatmul.f32.gmra.mxu0 %v63
    %v86 = vpop.f32.mrf.mxu0
    %v87 = vadd.f32 %v59, %v86
    %88 = vdwg.mxu0
    %89 = vst.msk [vmem:[#allocation8] sm:$0xff] %vm61, %v87
    // Predicated region
    $region30: #{tpu_custom_call.1} parent=1 // pred_check
      _
    $region31: #{tpu_custom_call.1} parent=1 // pred_check_branch
      %91 = sbr.rel (0) target = $region33
    $region32: #{tpu_custom_call.1} parent=1 // pred_region
      %93 = vsyncadd [#allocation5], 0
      %s95 = sshll.u32 [#allocation8], 4
      %s96 = int_to_ptr.vmem [resolvable:$true] %s95
      %s97 = sshll.u32 %s5, 4
      %s98 = int_to_ptr.hbm [resolvable:$true] %s97
      %100 = dma.vmem_to_hbm [thread:$0]  %s96, 128, %s98, [#allocation5]
    $region33: #{tpu_custom_call.1} parent=1 // pred_fallthru
      _
    // Predicated region
    $region34: #{tpu_custom_call.1} parent=1 // pred_check
      _
    $region35: #{tpu_custom_call.1} parent=1 // pred_check_branch
      %102 = sbr.rel (0) target = $region37
    $region36: #{tpu_custom_call.1} parent=1 // pred_region
      %104 = dma.done [#allocation5], 128
    $region37: #{tpu_custom_call.1} parent=1 // pred_fallthru
      _
    %105 = vsyncpa [#allocation4], 1
    %106 = vsyncpa [#allocation7], 1
    %107 = vsyncpa [#allocation5], 1

</llo_original>
